<compile_context>
chip_gen: v7x
topology: tpu7x:2x2x1
jax: 0.10.0
libtpu: 0.0.40
codegen_flags: <defaults>
</compile_context>

<pallas_src>
import math

import jax
import jax.numpy as jnp
from jax.experimental import pallas as pl
from jax.experimental.pallas import tpu as pltpu

BN_EPS = 1e-5
ARC_S = 30.0
ARC_M = 0.5
COS_M = math.cos(ARC_M)
SIN_M = math.sin(ARC_M)
TH = math.cos(math.pi - ARC_M)
MM = math.sin(math.pi - ARC_M) * ARC_M
HIDDEN = 512

VMEM_LIMIT = 32 * 1024 * 1024


def _round_up(x, m):
    return pl.cdiv(x, m) * m


# ----------------------------- kernels ------------------------------------- #
def _head_kernel(x_ref, w1_ref, b1_ref, gamma_ref, beta_ref, out_ref, acc_ref):
    """fc1 (tiled over F, bf16 MXU / f32 acc) -> BatchNorm1d -> ReLU ->
    L2-normalize rows (the arcface input)."""
    k = pl.program_id(0)

    @pl.when(k == 0)
    def _init():
        acc_ref[...] = jnp.zeros_like(acc_ref)

    acc_ref[...] += jnp.dot(x_ref[...], w1_ref[...],
                            preferred_element_type=jnp.float32)

    @pl.when(k == pl.num_programs(0) - 1)
    def _finalize():
        z = acc_ref[...] + b1_ref[...]                       # (B, 512) f32
        # BatchNorm1d (training mode: biased batch statistics).
        mean = jnp.mean(z, axis=0, keepdims=True)
        var = jnp.mean((z - mean) ** 2, axis=0, keepdims=True)
        zn = (z - mean) * jax.lax.rsqrt(var + BN_EPS)
        h = jnp.maximum(gamma_ref[...] * zn + beta_ref[...], 0.0)   # ReLU
        # L2-normalize rows (== F.normalize(input) inside ArcMarginProduct).
        inv = jax.lax.rsqrt(
            jnp.maximum(jnp.sum(h * h, axis=1, keepdims=True), 1e-24))
        out_ref[...] = (h * inv).astype(out_ref.dtype)


def _arcface_kernel(xn_ref, wa_ref, invn_ref, label_ref, out_ref):
    j = pl.program_id(0)
    tn = out_ref.shape[1]

    # cosine = (xn @ W) * (1/||W_col||)  ==  xn @ normalize(W, axis=0)
    cosine = jnp.dot(xn_ref[...], wa_ref[...],
                     preferred_element_type=jnp.float32) * invn_ref[...]
    sine = jnp.sqrt(jnp.clip(1.0 - cosine * cosine, 0.0, 1.0))
    phi = cosine * COS_M - sine * SIN_M
    phi = jnp.where(cosine > TH, phi, cosine - MM)           # easy_margin=False

    cls_idx = jax.lax.broadcasted_iota(jnp.int32, cosine.shape, 1) + j * tn
    is_target = cls_idx == label_ref[...]                    # (B, TN) bool
    out_ref[...] = ARC_S * jnp.where(is_target, phi, cosine)


# ----------------------------- param prep (one-time) ------------------------ #
def prepare_params(raw, *, tile_k=3840, tile_n=4096):
    """One-time preprocessing of the head / arcface weights.

    Pads w1_t to a multiple of tile_k, pads wa_t to a multiple of tile_n, and
    precomputes the arcface inverse column norms (zero for padded classes).
    Done once here instead of every forward call.
    """
    w1_t = raw["w1_t"].astype(jnp.bfloat16)                  # (F, 512)
    wa_t = raw["wa_t"].astype(jnp.bfloat16)                  # (512, N)
    F = w1_t.shape[0]
    n_classes = wa_t.shape[1]

    tile_k = min(tile_k, _round_up(F, 128))
    assert tile_k % 128 == 0
    Fp = _round_up(F, tile_k)
    if Fp != F:
        # Zero rows never contribute (zero activation pad x zero weight rows).
        w1_t = jnp.pad(w1_t, ((0, Fp - F), (0, 0)))

    tile_n = min(tile_n, _round_up(n_classes, 128))
    assert tile_n % 128 == 0
    Np = _round_up(n_classes, tile_n)
    # Inverse column norms in f32 (== F.normalize(weight) per class).
    inv_wnorm = jax.lax.rsqrt(
        jnp.maximum(jnp.sum(wa_t.astype(jnp.float32) ** 2, axis=0,
                            keepdims=True), 1e-24))          # (1, N) f32
    if Np != n_classes:
        wa_t = jnp.pad(wa_t, ((0, 0), (0, Np - n_classes)))
        # Padded classes get inv norm 0 -> logits exactly 0 (sliced off anyway).
        inv_wnorm = jnp.pad(inv_wnorm, ((0, 0), (0, Np - n_classes)))

    return {
        "w1_t": w1_t, "b1": raw["b1"], "gamma": raw["gamma"], "beta": raw["beta"],
        "wa_t": wa_t, "inv_wnorm": inv_wnorm,
        "F": F, "F_pad": Fp, "tile_k": tile_k,
        "n_classes": n_classes, "n_pad": Np, "tile_n": tile_n,
    }


# ----------------------------- wrappers ------------------------------------ #
def head_forward(x, w1_t, b1, gamma, beta, *, tile_k):
    """x: (B, Fp) bf16 (pooled+flattened); w1_t: (Fp, 512) bf16 (pre-padded)."""
    B, Fp = x.shape
    assert Fp % tile_k == 0 and w1_t.shape[0] == Fp

    return pl.pallas_call(
        _head_kernel,
        out_shape=jax.ShapeDtypeStruct((B, HIDDEN), jnp.bfloat16),
        grid_spec=pltpu.PrefetchScalarGridSpec(
            num_scalar_prefetch=0,
            grid=(Fp // tile_k,),
            in_specs=[
                pl.BlockSpec((B, tile_k), lambda k: (0, k)),
                pl.BlockSpec((tile_k, HIDDEN), lambda k: (k, 0)),
                pl.BlockSpec((1, HIDDEN), lambda k: (0, 0)),
                pl.BlockSpec((1, HIDDEN), lambda k: (0, 0)),
                pl.BlockSpec((1, HIDDEN), lambda k: (0, 0)),
            ],
            out_specs=pl.BlockSpec((B, HIDDEN), lambda k: (0, 0)),
            scratch_shapes=[pltpu.VMEM((B, HIDDEN), jnp.float32)],
        ),
        compiler_params=pltpu.CompilerParams(
            dimension_semantics=("arbitrary",),
            vmem_limit_bytes=VMEM_LIMIT),
    )(x, w1_t, b1, gamma, beta)


def arcface_forward(xn, wa_t, inv_wnorm, labels, n_classes, *, tile_n):
    """xn: (B, 512) bf16 (L2-normalized); wa_t: (512, Np) bf16 (pre-padded);
    inv_wnorm: (1, Np) f32 (precomputed, 0 on padded classes)."""
    B, D = xn.shape
    Np = wa_t.shape[1]
    assert Np % tile_n == 0 and inv_wnorm.shape[1] == Np

    labels2d = labels.reshape(B, 1).astype(jnp.int32)

    cost = pl.CostEstimate(
        flops=2 * B * D * Np,
        transcendentals=B * Np,
        bytes_accessed=B * D * 2 + D * Np * 2 + 4 * Np + 4 * B + 4 * B * Np,
    )

    out = pl.pallas_call(
        _arcface_kernel,
        out_shape=jax.ShapeDtypeStruct((B, Np), jnp.float32),
        grid_spec=pltpu.PrefetchScalarGridSpec(
            num_scalar_prefetch=0,
            grid=(Np // tile_n,),
            in_specs=[
                pl.BlockSpec((B, D), lambda j: (0, 0)),
                pl.BlockSpec((D, tile_n), lambda j: (0, j)),
                pl.BlockSpec((1, tile_n), lambda j: (0, j)),
                pl.BlockSpec((B, 1), lambda j: (0, 0)),
            ],
            out_specs=pl.BlockSpec((B, tile_n), lambda j: (0, j)),
        ),
        compiler_params=pltpu.CompilerParams(
            dimension_semantics=("parallel",),
            vmem_limit_bytes=VMEM_LIMIT),
        cost_estimate=cost,
    )(xn, wa_t, inv_wnorm, labels2d)
    return out[:, :n_classes]


def pool_and_flatten(x_feat):
    """MaxPool2d(2,2) + Flatten (NCHW flatten order), cast to bf16 for the MXU."""
    B, C, Hf, Wf = x_feat.shape
    Ho, Wo = Hf // 2, Wf // 2
    pooled = (x_feat[:, :, : Ho * 2, : Wo * 2]
              .reshape(B, C, Ho, 2, Wo, 2).max(axis=(3, 5)))
    return pooled.reshape(B, C * Ho * Wo).astype(jnp.bfloat16)


def transfer_model_forward(prepared, x_feat, y):
    """x_feat: backbone features, NCHW float32; y: int labels (B,)."""
    x = pool_and_flatten(x_feat)                              # (B, F) bf16
    F, Fp = prepared["F"], prepared["F_pad"]
    assert x.shape[1] == F
    if Fp != F:
        x = jnp.pad(x, ((0, 0), (0, Fp - F)))                 # cheap: B x (Fp-F)

    xn = head_forward(x, prepared["w1_t"], prepared["b1"],
                      prepared["gamma"], prepared["beta"],
                      tile_k=prepared["tile_k"])
    return arcface_forward(xn, prepared["wa_t"], prepared["inv_wnorm"], y,
                           prepared["n_classes"], tile_n=prepared["tile_n"])


# ----------------------------- reference ----------------------------------- #
def reference_forward(raw, x_feat, y, n_classes):
    B, C, Hf, Wf = x_feat.shape
    Ho, Wo = Hf // 2, Wf // 2
    pooled = (x_feat[:, :, : Ho * 2, : Wo * 2]
              .reshape(B, C, Ho, 2, Wo, 2).max(axis=(3, 5)).reshape(B, -1))
    w1 = raw["w1_t"].astype(jnp.float32)
    z = pooled @ w1 + raw["b1"]
    mean = z.mean(0, keepdims=True)
    var = ((z - mean) ** 2).mean(0, keepdims=True)
    h = jnp.maximum(
        raw["gamma"] * (z - mean) / jnp.sqrt(var + BN_EPS) + raw["beta"], 0.0)
    xn = h / jnp.maximum(jnp.linalg.norm(h, axis=1, keepdims=True), 1e-12)
    w = raw["wa_t"].astype(jnp.float32)
    wn = w / jnp.maximum(jnp.linalg.norm(w, axis=0, keepdims=True), 1e-12)
    cosine = xn @ wn
    sine = jnp.sqrt(jnp.clip(1.0 - cosine ** 2, 0.0, 1.0))
    phi = cosine * COS_M - sine * SIN_M
    phi = jnp.where(cosine > TH, phi, cosine - MM)
    one_hot = jax.nn.one_hot(y, n_classes, dtype=jnp.float32)
    return ARC_S * (one_hot * phi + (1.0 - one_hot) * cosine)


# ----------------------------- main ----------------------------------------- #
if __name__ == "__main__":
    key = jax.random.PRNGKey(0)
    k_feat, k_w1, k_b1, k_g, k_b, k_wa, k_y = jax.random.split(key, 7)

    # Small, TPU-friendly stand-ins for EfficientNet-b1 feature map / head sizes.
    B, C, Hf, Wf = 8, 128, 6, 6          # backbone feature map (NCHW)
    F = C * (Hf // 2) * (Wf // 2)        # 1152 (stands in for 11520)
    N_CLASSES = 3000                     # not a multiple of tile_n (like 81313)

    x_feat = jax.random.normal(k_feat, (B, C, Hf, Wf), dtype=jnp.float32)
    y = jax.random.randint(k_y, (B,), 0, N_CLASSES, dtype=jnp.int32)

    raw = {
        "w1_t": (0.02 * jax.random.normal(k_w1, (F, HIDDEN), dtype=jnp.float32)
                 ).astype(jnp.bfloat16),
        "b1": 0.01 * jax.random.normal(k_b1, (1, HIDDEN), dtype=jnp.float32),
        "gamma": 1.0 + 0.1 * jax.random.normal(k_g, (1, HIDDEN), dtype=jnp.float32),
        "beta": 0.1 * jax.random.normal(k_b, (1, HIDDEN), dtype=jnp.float32),
        "wa_t": (0.05 * jax.random.normal(k_wa, (HIDDEN, N_CLASSES),
                                          dtype=jnp.float32)).astype(jnp.bfloat16),
    }

    # One-time weight prep (padding + arcface column norms), done outside the
    # forward path.  tile_k=384 divides the test F=1152 (3 grid steps, no pad);
    # tile_n=1024 exercises class-axis tiling (3 tiles) with class padding.
    # Real-size defaults would be tile_k=3840 (divides 11520) and tile_n=4096.
    prepared = prepare_params(raw, tile_k=384, tile_n=1024)
    prepared = jax.block_until_ready(prepared)

    out = transfer_model_forward(prepared, x_feat, y)
    out = jax.block_until_ready(out)

    ref = reference_forward(raw, x_feat, y, N_CLASSES)
    assert out.shape == (B, N_CLASSES)
    assert jnp.allclose(out, ref, rtol=1e-2, atol=5e-2), (
        f"max abs err {jnp.max(jnp.abs(out - ref))}")

    print("KERNEL_OK")
</pallas_src>

<mosaic_0001>
module attributes {stable_mosaic.version = 11 : i64} {
  func.func @_head_kernel(%arg0: i32, %arg1: memref<8x384xbf16, #tpu.memory_space<vmem>>, %arg2: memref<384x512xbf16, #tpu.memory_space<vmem>>, %arg3: memref<1x512xf32, #tpu.memory_space<vmem>>, %arg4: memref<1x512xf32, #tpu.memory_space<vmem>>, %arg5: memref<1x512xf32, #tpu.memory_space<vmem>>, %arg6: memref<8x512xbf16, #tpu.memory_space<vmem>>, %arg7: memref<8x512xf32, #tpu.memory_space<vmem>>) attributes {dimension_semantics = [#tpu.dimension_semantics<arbitrary>], iteration_bounds = array<i64: 3>, scalar_prefetch = 0 : i64, scratch_operands = 1 : i64, tpu.core_type = #tpu.core_type<tc>, window_params = [{transform_indices = @transform_0, window_bounds = array<i64: 8, 384>}, {transform_indices = @transform_1, window_bounds = array<i64: 384, 512>}, {pipeline_mode = #tpu.pipeline_mode<synchronous>, transform_indices = @transform_2, window_bounds = array<i64: 1, 512>}, {pipeline_mode = #tpu.pipeline_mode<synchronous>, transform_indices = @transform_3, window_bounds = array<i64: 1, 512>}, {pipeline_mode = #tpu.pipeline_mode<synchronous>, transform_indices = @transform_4, window_bounds = array<i64: 1, 512>}, {pipeline_mode = #tpu.pipeline_mode<synchronous>, transform_indices = @transform_5, window_bounds = array<i64: 8, 512>}]} {
    %c0_i32 = arith.constant 0 : i32
    %0 = arith.cmpi eq, %arg0, %c0_i32 : i32
    %1 = arith.extui %0 : i1 to i32
    %c0_i32_0 = arith.constant 0 : i32
    %2 = arith.cmpi ne, %1, %c0_i32_0 : i32
    scf.if %2 {
      %cst_9 = arith.constant 0.000000e+00 : f32
      %12 = vector.broadcast %cst_9 : f32 to vector<8x512xf32>
      %c0_10 = arith.constant 0 : index
      %c0_11 = arith.constant 0 : index
      %13 = vector.load %arg7[%c0_10, %c0_11] : memref<8x512xf32, #tpu.memory_space<vmem>>, vector<8x512xf32>
      tpu.vector_store %arg7[%c0_10, %c0_11], %12 {strides = array<i32>} : memref<8x512xf32, #tpu.memory_space<vmem>>, vector<8x512xf32>,
    } else {
    }
    %c0 = arith.constant 0 : index
    %c0_1 = arith.constant 0 : index
    %3 = vector.load %arg7[%c0, %c0_1] : memref<8x512xf32, #tpu.memory_space<vmem>>, vector<8x512xf32>
    %c0_2 = arith.constant 0 : index
    %c0_3 = arith.constant 0 : index
    %4 = vector.load %arg1[%c0_2, %c0_3] : memref<8x384xbf16, #tpu.memory_space<vmem>>, vector<8x384xbf16>
    %c0_4 = arith.constant 0 : index
    %c0_5 = arith.constant 0 : index
    %5 = vector.load %arg2[%c0_4, %c0_5] : memref<384x512xbf16, #tpu.memory_space<vmem>>, vector<384x512xbf16>
    %cst = arith.constant dense<0.000000e+00> : vector<8x512xf32>
    %6 = tpu.matmul %4, %5, %cst {dimension_numbers = #tpu.dot_dimension_numbers<[1], [0], [0], [1], [0, 0, 1, 1], [], []>} : vector<8x384xbf16>, vector<384x512xbf16>, vector<8x512xf32> -> vector<8x512xf32>
    %7 = arith.addf %3, %6 : vector<8x512xf32>
    %c0_6 = arith.constant 0 : index
    %c0_7 = arith.constant 0 : index
    %8 = vector.load %arg7[%c0_6, %c0_7] : memref<8x512xf32, #tpu.memory_space<vmem>>, vector<8x512xf32>
    tpu.vector_store %arg7[%c0_6, %c0_7], %7 {strides = array<i32>} : memref<8x512xf32, #tpu.memory_space<vmem>>, vector<8x512xf32>,
    %c2_i32 = arith.constant 2 : i32
    %9 = arith.cmpi eq, %arg0, %c2_i32 : i32
    %10 = arith.extui %9 : i1 to i32
    %c0_i32_8 = arith.constant 0 : i32
    %11 = arith.cmpi ne, %10, %c0_i32_8 : i32
    scf.if %11 {
      %c0_9 = arith.constant 0 : index
      %c0_10 = arith.constant 0 : index
      %12 = vector.load %arg7[%c0_9, %c0_10] : memref<8x512xf32, #tpu.memory_space<vmem>>, vector<8x512xf32>
      %c0_11 = arith.constant 0 : index
      %c0_12 = arith.constant 0 : index
      %13 = vector.load %arg3[%c0_11, %c0_12] : memref<1x512xf32, #tpu.memory_space<vmem>>, vector<1x512xf32>
      %14 = vector.broadcast %13 : vector<1x512xf32> to vector<8x512xf32>
      %15 = arith.addf %12, %14 : vector<8x512xf32>
      %cst_13 = arith.constant dense<0.000000e+00> : vector<512xf32>
      %16 = vector.multi_reduction <add>, %15, %cst_13 [0] : vector<8x512xf32> to vector<512xf32>
      %17 = vector.shape_cast %16 : vector<512xf32> to vector<1x512xf32>
      %cst_14 = arith.constant 8.000000e+00 : f32
      %18 = vector.broadcast %cst_14 : f32 to vector<1x512xf32>
      %19 = arith.divf %17, %18 : vector<1x512xf32>
      %20 = vector.broadcast %19 : vector<1x512xf32> to vector<8x512xf32>
      %21 = arith.subf %15, %20 : vector<8x512xf32>
      %22 = arith.mulf %21, %21 : vector<8x512xf32>
      %cst_15 = arith.constant dense<0.000000e+00> : vector<512xf32>
      %23 = vector.multi_reduction <add>, %22, %cst_15 [0] : vector<8x512xf32> to vector<512xf32>
      %24 = vector.shape_cast %23 : vector<512xf32> to vector<1x512xf32>
      %cst_16 = arith.constant 8.000000e+00 : f32
      %25 = vector.broadcast %cst_16 : f32 to vector<1x512xf32>
      %26 = arith.divf %24, %25 : vector<1x512xf32>
      %27 = vector.broadcast %19 : vector<1x512xf32> to vector<8x512xf32>
      %28 = arith.subf %15, %27 : vector<8x512xf32>
      %cst_17 = arith.constant 9.99999974E-6 : f32
      %29 = vector.broadcast %cst_17 : f32 to vector<1x512xf32>
      %30 = arith.addf %26, %29 : vector<1x512xf32>
      %31 = math.rsqrt %30 : vector<1x512xf32>
      %32 = vector.broadcast %31 : vector<1x512xf32> to vector<8x512xf32>
      %33 = arith.mulf %28, %32 : vector<8x512xf32>
      %c0_18 = arith.constant 0 : index
      %c0_19 = arith.constant 0 : index
      %34 = vector.load %arg4[%c0_18, %c0_19] : memref<1x512xf32, #tpu.memory_space<vmem>>, vector<1x512xf32>
      %35 = vector.broadcast %34 : vector<1x512xf32> to vector<8x512xf32>
      %36 = arith.mulf %35, %33 : vector<8x512xf32>
      %c0_20 = arith.constant 0 : index
      %c0_21 = arith.constant 0 : index
      %37 = vector.load %arg5[%c0_20, %c0_21] : memref<1x512xf32, #tpu.memory_space<vmem>>, vector<1x512xf32>
      %38 = vector.broadcast %37 : vector<1x512xf32> to vector<8x512xf32>
      %39 = arith.addf %36, %38 : vector<8x512xf32>
      %cst_22 = arith.constant 0.000000e+00 : f32
      %40 = vector.broadcast %cst_22 : f32 to vector<8x512xf32>
      %41 = arith.maximumf %39, %40 : vector<8x512xf32>
      %42 = arith.mulf %41, %41 : vector<8x512xf32>
      %cst_23 = arith.constant dense<0.000000e+00> : vector<8xf32>
      %43 = vector.multi_reduction <add>, %42, %cst_23 [1] : vector<8x512xf32> to vector<8xf32>
      %44 = vector.shape_cast %43 : vector<8xf32> to vector<8x1xf32>
      %cst_24 = arith.constant 1.000000e-24 : f32
      %45 = vector.broadcast %cst_24 : f32 to vector<8x1xf32>
      %46 = arith.maximumf %44, %45 : vector<8x1xf32>
      %47 = math.rsqrt %46 : vector<8x1xf32>
      %48 = vector.broadcast %47 : vector<8x1xf32> to vector<8x512xf32>
      %49 = arith.mulf %41, %48 : vector<8x512xf32>
      %50 = arith.truncf %49 : vector<8x512xf32> to vector<8x512xbf16>
      %c0_25 = arith.constant 0 : index
      %c0_26 = arith.constant 0 : index
      %51 = vector.load %arg6[%c0_25, %c0_26] : memref<8x512xbf16, #tpu.memory_space<vmem>>, vector<8x512xbf16>
      tpu.vector_store %arg6[%c0_25, %c0_26], %50 {strides = array<i32>} : memref<8x512xbf16, #tpu.memory_space<vmem>>, vector<8x512xbf16>,
    } else {
    }
    return
  }
  func.func @transform_0(%arg0: i32) -> (i32, i32) {
    %c0_i32 = arith.constant 0 : i32
    %c0_i32_0 = arith.constant 0 : i32
    return %c0_i32, %arg0 : i32, i32
  }
  func.func @transform_1(%arg0: i32) -> (i32, i32) {
    %c0_i32 = arith.constant 0 : i32
    %c0_i32_0 = arith.constant 0 : i32
    return %arg0, %c0_i32 : i32, i32
  }
  func.func @transform_2(%arg0: i32) -> (i32, i32) {
    %c0_i32 = arith.constant 0 : i32
    %c0_i32_0 = arith.constant 0 : i32
    %c0_i32_1 = arith.constant 0 : i32
    return %c0_i32, %c0_i32_0 : i32, i32
  }
  func.func @transform_3(%arg0: i32) -> (i32, i32) {
    %c0_i32 = arith.constant 0 : i32
    %c0_i32_0 = arith.constant 0 : i32
    %c0_i32_1 = arith.constant 0 : i32
    return %c0_i32, %c0_i32_0 : i32, i32
  }
  func.func @transform_4(%arg0: i32) -> (i32, i32) {
    %c0_i32 = arith.constant 0 : i32
    %c0_i32_0 = arith.constant 0 : i32
    %c0_i32_1 = arith.constant 0 : i32
    return %c0_i32, %c0_i32_0 : i32, i32
  }
  func.func @transform_5(%arg0: i32) -> (i32, i32) {
    %c0_i32 = arith.constant 0 : i32
    %c0_i32_0 = arith.constant 0 : i32
    %c0_i32_1 = arith.constant 0 : i32
    return %c0_i32, %c0_i32_0 : i32, i32
  }
}

</mosaic_0001>

<llo_original>
// kernel: tpu_custom_call.1
$region0: #{tpu_custom_call.1}
  #allocation0 [shape = 'u32[]', space=smem, size = 0x4, offset = 0x4, fixed_abs, tag = 'smem constant byte address 0x4 - core index']
  #allocation1 [shape = 'u32[144,128]{1,0:T(1,128)}', space=vmem, size = 0x12000, scoped, tag = 'internal scratch']
  #allocation2 [shape = 'f32[8,512]{1,0:T(8,128)}', space=vmem, size = 0x4000, scoped, tag = 'scratch operand']
  %s0 = inlined_call_operand.hbm [shape: bf16[8,1152], index: 0, kind: input, shape index: {}]
  %s1 = inlined_call_operand.hbm [shape: bf16[1152,512], index: 1, kind: input, shape index: {}]
  %s2 = inlined_call_operand.hbm [shape: f32[1,512], index: 2, kind: input, shape index: {}]
  %s3 = inlined_call_operand.hbm [shape: f32[1,512], index: 3, kind: input, shape index: {}]
  %s4 = inlined_call_operand.hbm [shape: f32[1,512], index: 4, kind: input, shape index: {}]
  %s5 = inlined_call_operand.hbm [shape: bf16[8,512], index: 5, kind: output, shape index: {}]
  %s6 = sld [smem:[#allocation0]]
  $region81: #{tpu_custom_call.1} parent=0
    _
  %s8 = ssub.s32 1, %s6
  %s9 = scalar_select 0, %s8, %s6
  $region1: #{tpu_custom_call.1} parent=0
    #allocation3 [shape = 'u8[12288]{0}', space=vmem, size = 0x3000, scoped, tag = 'input window, operand 0']
    #allocation4 [shape = 's32[2]{0}', space=sflag, size = 0x8, scoped, tag = 'scoped memory for tpu_custom_call.1']
    #allocation5 [shape = 's32[2]{0}', space=sflag, size = 0x8, scoped, tag = 'scoped memory for tpu_custom_call.1']
    #allocation6 [shape = 'u8[786432]{0}', space=vmem, size = 0xc0000, scoped, tag = 'input window, operand 1']
    #allocation7 [shape = 's32[2]{0}', space=sflag, size = 0x8, scoped, tag = 'scoped memory for tpu_custom_call.1']
    #allocation8 [shape = 'u8[2048]{0}', space=vmem, size = 0x800, scoped, tag = 'input window, operand 2, single buffered']
    #allocation9 [shape = 'u8[2048]{0}', space=vmem, size = 0x800, scoped, tag = 'input window, operand 3, single buffered']
    #allocation10 [shape = 's32[1]{0}', space=sflag, size = 0x4, scoped, tag = 'scoped memory for tpu_custom_call.1']
    #allocation11 [shape = 'u8[2048]{0}', space=vmem, size = 0x800, scoped, tag = 'input window, operand 4, single buffered']
    #allocation12 [shape = 'u8[8192]{0}', space=vmem, size = 0x2000, scoped, tag = 'output window, operand 0, single buffered']
    %10 = vsyncpa [#allocation4], 0
    %s11 = scalar_lea.sflag [#allocation4], 1
    %12 = vsyncpa %s11, 0
    %13 = vsyncpa [#allocation7], 0
    %s14 = scalar_lea.sflag [#allocation7], 1
    %15 = vsyncpa %s14, 0
    %16 = vsyncpa [#allocation10], 0
    %17 = vsyncpa [#allocation5], 0
    loop: start=0, step=1, limit=5
    $region2: #{tpu_custom_call.1} parent=1 // loop_pre_header
      _
    $region3: #{tpu_custom_call.1} parent=1 // loop_header
      %s19 = sphi 0, %s23
      %p20 = scmp.ge.s32.totalorder %s19, 5
      %s29 = sphi 0, %s31
      %s32 = sphi 0, %s29
      %s33 = sphi 0, %s32
      %s49 = sphi 0, %s33
      %s55 = sphi 0, %s57
      %s58 = sphi 0, %s55
      %s59 = sphi 0, %s58
      %s75 = sphi 0, %s59
      %s79 = sphi 0, %s79
      %s81 = sphi 0, %s79
      %s82 = sphi 0, %s81
      %s96 = sphi 0, %s82
      %s100 = sphi 0, %s100
      %s102 = sphi 0, %s100
      %s103 = sphi 0, %s102
      %s117 = sphi 0, %s103
      %s121 = sphi 0, %s121
      %s123 = sphi 0, %s121
      %s124 = sphi 0, %s123
      %s138 = sphi 0, %s124
      %s142 = sphi 0, %s142
      %s144 = sphi 0, %s142
      %s145 = sphi 0, %s144
      %s159 = sphi 0, %s145
    $region4: #{tpu_custom_call.1} parent=1 // loop_header_branch
      %22 = sbr.rel (%p20) target = $region8
    $region5: #{tpu_custom_call.1} parent=1 // loop_body
      %s24 = ssub.s32 %s19, 1
      %s25 = ssub.s32 %s19, 2
      %s26 = sadd.s32 %s19, 1
      %s27 = ssub.s32 %s19, %s26
      %p28 = scmp.eq.s32.totalorder %s27, 0
      %s30 = sadd.s32 %s29, 1
      %s31 = scalar_select %p28, %s29, %s30
      %p34 = pneg %p28
      %p35 = scmp.eq.s32.totalorder %s19, 2
      %p36 = por %p34, %p35
      %p37 = scmp.ne.s32.totalorder %s29, %s32
      %p38 = scmp.eq.s32.totalorder %s19, 0
      %p39 = por %p37, %p38
      %p40 = scmp.ne.s32.totalorder %s29, %s32
      %p41 = scmp.eq.s32.totalorder %s24, 2
      %p42 = por %p40, %p41
      %p43 = scmp.ne.s32.totalorder %s32, %s33
      %p44 = scmp.eq.s32.totalorder %s24, 0
      %p45 = por %p43, %p44
      %p46 = scmp.ne.s32.totalorder %s32, %s33
      %p47 = scmp.eq.s32.totalorder %s25, 2
      %p48 = por %p46, %p47
      %p50 = scmp.ne.s32.totalorder %s33, %s49
      %p51 = scmp.eq.s32.totalorder %s25, 0
      %p52 = por %p50, %p51
      %s53 = ssub.s32 %s19, %s26
      %p54 = scmp.eq.s32.totalorder %s53, 0
      %s56 = sadd.s32 %s55, 1
      %s57 = scalar_select %p54, %s55, %s56
      %p60 = pneg %p54
      %p61 = scmp.eq.s32.totalorder %s19, 2
      %p62 = por %p60, %p61
      %p63 = scmp.ne.s32.totalorder %s55, %s58
      %p64 = scmp.eq.s32.totalorder %s19, 0
      %p65 = por %p63, %p64
      %p66 = scmp.ne.s32.totalorder %s55, %s58
      %p67 = scmp.eq.s32.totalorder %s24, 2
      %p68 = por %p66, %p67
      %p69 = scmp.ne.s32.totalorder %s58, %s59
      %p70 = scmp.eq.s32.totalorder %s24, 0
      %p71 = por %p69, %p70
      %p72 = scmp.ne.s32.totalorder %s58, %s59
      %p73 = scmp.eq.s32.totalorder %s25, 2
      %p74 = por %p72, %p73
      %p76 = scmp.ne.s32.totalorder %s59, %s75
      %p77 = scmp.eq.s32.totalorder %s25, 0
      %p78 = por %p76, %p77
      %s80 = sadd.s32 %s79, 1
      %p83 = scmp.eq.s32.totalorder %s19, 2
      %p84 = scmp.ne.s32.totalorder %s79, %s81
      %p85 = scmp.eq.s32.totalorder %s19, 0
      %p86 = por %p84, %p85
      %p87 = scmp.ne.s32.totalorder %s79, %s81
      %p88 = scmp.eq.s32.totalorder %s24, 2
      %p89 = por %p87, %p88
      %p90 = scmp.ne.s32.totalorder %s81, %s82
      %p91 = scmp.eq.s32.totalorder %s24, 0
      %p92 = por %p90, %p91
      %p93 = scmp.ne.s32.totalorder %s81, %s82
      %p94 = scmp.eq.s32.totalorder %s25, 2
      %p95 = por %p93, %p94
      %p97 = scmp.ne.s32.totalorder %s82, %s96
      %p98 = scmp.eq.s32.totalorder %s25, 0
      %p99 = por %p97, %p98
      %s101 = sadd.s32 %s100, 1
      %p104 = scmp.eq.s32.totalorder %s19, 2
      %p105 = scmp.ne.s32.totalorder %s100, %s102
      %p106 = scmp.eq.s32.totalorder %s19, 0
      %p107 = por %p105, %p106
      %p108 = scmp.ne.s32.totalorder %s100, %s102
      %p109 = scmp.eq.s32.totalorder %s24, 2
      %p110 = por %p108, %p109
      %p111 = scmp.ne.s32.totalorder %s102, %s103
      %p112 = scmp.eq.s32.totalorder %s24, 0
      %p113 = por %p111, %p112
      %p114 = scmp.ne.s32.totalorder %s102, %s103
      %p115 = scmp.eq.s32.totalorder %s25, 2
      %p116 = por %p114, %p115
      %p118 = scmp.ne.s32.totalorder %s103, %s117
      %p119 = scmp.eq.s32.totalorder %s25, 0
      %p120 = por %p118, %p119
      %s122 = sadd.s32 %s121, 1
      %p125 = scmp.eq.s32.totalorder %s19, 2
      %p126 = scmp.ne.s32.totalorder %s121, %s123
      %p127 = scmp.eq.s32.totalorder %s19, 0
      %p128 = por %p126, %p127
      %p129 = scmp.ne.s32.totalorder %s121, %s123
      %p130 = scmp.eq.s32.totalorder %s24, 2
      %p131 = por %p129, %p130
      %p132 = scmp.ne.s32.totalorder %s123, %s124
      %p133 = scmp.eq.s32.totalorder %s24, 0
      %p134 = por %p132, %p133
      %p135 = scmp.ne.s32.totalorder %s123, %s124
      %p136 = scmp.eq.s32.totalorder %s25, 2
      %p137 = por %p135, %p136
      %p139 = scmp.ne.s32.totalorder %s124, %s138
      %p140 = scmp.eq.s32.totalorder %s25, 0
      %p141 = por %p139, %p140
      %s143 = sadd.s32 %s142, 1
      %p146 = scmp.eq.s32.totalorder %s19, 2
      %p147 = scmp.ne.s32.totalorder %s142, %s144
      %p148 = scmp.eq.s32.totalorder %s19, 0
      %p149 = por %p147, %p148
      %p150 = scmp.ne.s32.totalorder %s142, %s144
      %p151 = scmp.eq.s32.totalorder %s24, 2
      %p152 = por %p150, %p151
      %p153 = scmp.ne.s32.totalorder %s144, %s145
      %p154 = scmp.eq.s32.totalorder %s24, 0
      %p155 = por %p153, %p154
      %p156 = scmp.ne.s32.totalorder %s144, %s145
      %p157 = scmp.eq.s32.totalorder %s25, 2
      %p158 = por %p156, %p157
      %p160 = scmp.ne.s32.totalorder %s145, %s159
      %p161 = scmp.eq.s32.totalorder %s25, 0
      %p162 = por %p160, %p161
      %p163 = scmp.le.s32.totalorder 1, %s19
      %p164 = scmp.lt.s32.totalorder %s19, 4
      %p165 = pnand %p163, %p164
      %p166 = pneg %p165
      // Predicated region
      $region9: #{tpu_custom_call.1} parent=5 // pred_check
        _
      $region10: #{tpu_custom_call.1} parent=5 // pred_check_branch
        %168 = sbr.rel (%p165) target = $region12
      $region11: #{tpu_custom_call.1} parent=5 // pred_region
        %s169 = ssub.s32 %s19, 1
        // Predicated region
        $region13: #{tpu_custom_call.1} parent=11 // pred_check
          %p170 = pneg %p92
        $region14: #{tpu_custom_call.1} parent=11 // pred_check_branch
          %172 = sbr.rel (%p170) target = $region16
        $region15: #{tpu_custom_call.1} parent=11 // pred_region
          %s174 = ssub.s32 64, 64
          %175 = vsyncadd [#allocation7], %s174
          %s177 = sshll.u32 [#allocation8], 4
          %s178 = int_to_ptr.vmem [resolvable:$true] %s177
          %180 = dma.hbm_to_vmem [thread:$0]  %s2, 64, %s178, [#allocation7]
        $region16: #{tpu_custom_call.1} parent=11 // pred_fallthru
          _
        // Predicated region
        $region17: #{tpu_custom_call.1} parent=11 // pred_check
          %p181 = pneg %p113
        $region18: #{tpu_custom_call.1} parent=11 // pred_check_branch
          %183 = sbr.rel (%p181) target = $region20
        $region19: #{tpu_custom_call.1} parent=11 // pred_region
          %s185 = ssub.s32 64, 64
          %186 = vsyncadd [#allocation10], %s185
          %s188 = sshll.u32 [#allocation9], 4
          %s189 = int_to_ptr.vmem [resolvable:$true] %s188
          %191 = dma.hbm_to_vmem [thread:$0]  %s3, 64, %s189, [#allocation10]
        $region20: #{tpu_custom_call.1} parent=11 // pred_fallthru
          _
        // Predicated region
        $region21: #{tpu_custom_call.1} parent=11 // pred_check
          %p192 = pneg %p134
        $region22: #{tpu_custom_call.1} parent=11 // pred_check_branch
          %194 = sbr.rel (%p192) target = $region24
        $region23: #{tpu_custom_call.1} parent=11 // pred_region
          %s196 = ssub.s32 64, 64
          %197 = vsyncadd [#allocation10], %s196
          %s199 = sshll.u32 [#allocation11], 4
          %s200 = int_to_ptr.vmem [resolvable:$true] %s199
          %202 = dma.hbm_to_vmem [thread:$0]  %s4, 64, %s200, [#allocation10]
        $region24: #{tpu_custom_call.1} parent=11 // pred_fallthru
          _
      $region12: #{tpu_custom_call.1} parent=5 // pred_fallthru
        _
      %p203 = scmp.lt.s32.totalorder %s19, 3
      // Predicated region
      $region25: #{tpu_custom_call.1} parent=5 // pred_check
        %p204 = pneg %p203
      $region26: #{tpu_custom_call.1} parent=5 // pred_check_branch
        %206 = sbr.rel (%p204) target = $region28
      $region27: #{tpu_custom_call.1} parent=5 // pred_region
        // Predicated region
        $region29: #{tpu_custom_call.1} parent=27 // pred_check
          %p207 = pneg %p39
        $region30: #{tpu_custom_call.1} parent=27 // pred_check_branch
          %209 = sbr.rel (%p207) target = $region32
        $region31: #{tpu_custom_call.1} parent=27 // pred_region
          %s210 = sand.u32 %s29, 1
          %s211 = scalar_lea.sflag [#allocation4], %s210
          %s212 = sand.u32 %s29, 1
          %s213 = smul.addr %s212, 12
          %s214 = scalar_lea.vmem [#allocation3], %s213
          %s215 = smul.u32 3, %s19
          %s217 = ssub.s32 192, 192
          %218 = vsyncadd %s211, %s217
          %s219 = smul.addr %s215, 64
          %s220 = scalar_lea.hbm %s0, %s219
          %s222 = sshll.u32 %s214, 4
          %s223 = int_to_ptr.vmem [resolvable:$true] %s222
          %225 = dma.hbm_to_vmem [thread:$0]  %s220, 192, %s223, %s211
        $region32: #{tpu_custom_call.1} parent=27 // pred_fallthru
          _
        // Predicated region
        $region33: #{tpu_custom_call.1} parent=27 // pred_check
          %p226 = pneg %p65
        $region34: #{tpu_custom_call.1} parent=27 // pred_check_branch
          %228 = sbr.rel (%p226) target = $region36
        $region35: #{tpu_custom_call.1} parent=27 // pred_region
          %s229 = sand.u32 %s19, 1
          %s230 = scalar_lea.sflag [#allocation7], %s229
          %s231 = sand.u32 %s55, 1
          %s232 = smul.addr %s231, 768
          %s233 = scalar_lea.vmem [#allocation6], %s232
          %s234 = smul.u32 48, %s19
          %s236 = ssub.s32 12288, 12288
          %237 = vsyncadd %s230, %s236
          %s238 = smul.addr %s234, 4
          %s239 = smul.addr %s238, 64
          %s240 = scalar_lea.hbm %s1, %s239
          %s241 = sshll.u32 %s233, 4
          %s242 = int_to_ptr.vmem [resolvable:$true] %s241
          %247 = dma.hbm_to_vmem [thread:$0]  %s240, 12288, %s242, %s230, 256, 256, 16
        $region36: #{tpu_custom_call.1} parent=27 // pred_fallthru
          _
      $region28: #{tpu_custom_call.1} parent=5 // pred_fallthru
        _
      %p248 = scmp.le.s32.totalorder 1, %s19
      %p249 = scmp.lt.s32.totalorder %s19, 4
      %p250 = pnand %p248, %p249
      %p251 = pneg %p250
      // Predicated region
      $region37: #{tpu_custom_call.1} parent=5 // pred_check
        _
      $region38: #{tpu_custom_call.1} parent=5 // pred_check_branch
        %253 = sbr.rel (%p250) target = $region40
      $region39: #{tpu_custom_call.1} parent=5 // pred_region
        %s254 = ssub.s32 %s19, 1
        %s255 = sand.u32 %s32, 1
        %s256 = scalar_lea.sflag [#allocation4], %s255
        %s257 = sand.u32 %s32, 1
        %s258 = smul.addr %s257, 12
        %s259 = scalar_lea.vmem [#allocation3], %s258
        // Predicated region
        $region41: #{tpu_custom_call.1} parent=39 // pred_check
          %p260 = pneg %p45
        $region42: #{tpu_custom_call.1} parent=39 // pred_check_branch
          %262 = sbr.rel (%p260) target = $region44
        $region43: #{tpu_custom_call.1} parent=39 // pred_region
          %263 = dma.done %s256, 192
        $region44: #{tpu_custom_call.1} parent=39 // pred_fallthru
          _
        %s264 = sand.u32 %s24, 1
        %s265 = scalar_lea.sflag [#allocation7], %s264
        %s266 = sand.u32 %s58, 1
        %s267 = smul.addr %s266, 768
        %s268 = scalar_lea.vmem [#allocation6], %s267
        // Predicated region
        $region45: #{tpu_custom_call.1} parent=39 // pred_check
          %p269 = pneg %p71
        $region46: #{tpu_custom_call.1} parent=39 // pred_check_branch
          %271 = sbr.rel (%p269) target = $region48
        $region47: #{tpu_custom_call.1} parent=39 // pred_region
          %272 = dma.done %s265, 12288
        $region48: #{tpu_custom_call.1} parent=39 // pred_fallthru
          _
        // Predicated region
        $region49: #{tpu_custom_call.1} parent=39 // pred_check
          %p273 = pneg %p92
        $region50: #{tpu_custom_call.1} parent=39 // pred_check_branch
          %275 = sbr.rel (%p273) target = $region52
        $region51: #{tpu_custom_call.1} parent=39 // pred_region
          %276 = dma.done [#allocation7], 64
        $region52: #{tpu_custom_call.1} parent=39 // pred_fallthru
          _
        // Predicated region
        $region53: #{tpu_custom_call.1} parent=39 // pred_check
          %p277 = pneg %p113
        $region54: #{tpu_custom_call.1} parent=39 // pred_check_branch
          %279 = sbr.rel (%p277) target = $region56
        $region55: #{tpu_custom_call.1} parent=39 // pred_region
          %280 = dma.done [#allocation10], 64
        $region56: #{tpu_custom_call.1} parent=39 // pred_fallthru
          _
        // Predicated region
        $region57: #{tpu_custom_call.1} parent=39 // pred_check
          %p281 = pneg %p134
        $region58: #{tpu_custom_call.1} parent=39 // pred_check_branch
          %283 = sbr.rel (%p281) target = $region60
        $region59: #{tpu_custom_call.1} parent=39 // pred_region
          %284 = dma.done [#allocation10], 64
        $region60: #{tpu_custom_call.1} parent=39 // pred_fallthru
          _
        %s285 = sand.u32 %s32, 1
        %s286 = scalar_lea.sflag [#allocation4], %s285
        %s287 = sand.u32 %s32, 1
        %s288 = smul.addr %s287, 12
        %s289 = scalar_lea.vmem [#allocation3], %s288
        %p290 = pneg %p45
        %p291 = pneg %p42
        %s292 = sand.u32 %s24, 1
        %s293 = scalar_lea.sflag [#allocation7], %s292
        %s294 = sand.u32 %s58, 1
        %s295 = smul.addr %s294, 768
        %s296 = scalar_lea.vmem [#allocation6], %s295
        %p297 = pneg %p71
        %p298 = pneg %p68
        %p299 = pneg %p92
        %p300 = pneg %p89
        %p301 = pneg %p113
        %p302 = pneg %p110
        %p303 = pneg %p134
        %p304 = pneg %p131
        %p305 = pneg %p155
        %p306 = pneg %p152
        %s307 = smul.u32 3, %s24
        %s308 = smul.u32 48, %s24
        %p310 = scmp.eq.s32.totalorder %s24, 0
        // Predicated region
        $region61: #{tpu_custom_call.1} parent=39 // pred_check
          %p311 = pneg %p310
        $region62: #{tpu_custom_call.1} parent=39 // pred_check_branch
          %313 = sbr.rel (%p311) target = $region64
        $region63: #{tpu_custom_call.1} parent=39 // pred_region
          %314 = vst [vmem:[#allocation2] sm:$0xff] 0.0
          %315 = vst [vmem:[#allocation2 + $0x8] sm:$0xff] 0.0
          %316 = vst [vmem:[#allocation2 + $0x10] sm:$0xff] 0.0
          %317 = vst [vmem:[#allocation2 + $0x18] sm:$0xff] 0.0
        $region64: #{tpu_custom_call.1} parent=39 // pred_fallthru
          _
        %v318 = vld [vmem:[#allocation2] sm:$0xff]
        %v319 = vld [vmem:[#allocation2 + $0x8] sm:$0xff]
        %v320 = vld [vmem:[#allocation2 + $0x10] sm:$0xff]
        %v321 = vld [vmem:[#allocation2 + $0x18] sm:$0xff]
        %v322 = vld [vmem:[%s259] sm:$0xff]
        %v323 = vld [vmem:[%s259 + $0x8] sm:$0xf]
        %v324 = vld [vmem:[%s268] sm:$0xff]
        %v325 = vld [vmem:[%s268 + $0x8] sm:$0xff]
        %v326 = vld [vmem:[%s268 + $0x10] sm:$0xff]
        %v327 = vld [vmem:[%s268 + $0x18] sm:$0xff]
        %v328 = vld [vmem:[%s268 + $0x20] sm:$0xff]
        %v329 = vld [vmem:[%s268 + $0x28] sm:$0xff]
        %v330 = vld [vmem:[%s268 + $0x30] sm:$0xff]
        %v331 = vld [vmem:[%s268 + $0x38] sm:$0xff]
        %v332 = vld [vmem:[%s268 + $0x40] sm:$0xff]
        %v333 = vld [vmem:[%s268 + $0x48] sm:$0xff]
        %v334 = vld [vmem:[%s268 + $0x50] sm:$0xff]
        %v335 = vld [vmem:[%s268 + $0x58] sm:$0xff]
        %v336 = vld [vmem:[%s268 + $0x60] sm:$0xff]
        %v337 = vld [vmem:[%s268 + $0x68] sm:$0xff]
        %v338 = vld [vmem:[%s268 + $0x70] sm:$0xff]
        %v339 = vld [vmem:[%s268 + $0x78] sm:$0xff]
        %v340 = vld [vmem:[%s268 + $0x80] sm:$0xff]
        %v341 = vld [vmem:[%s268 + $0x88] sm:$0xff]
        %v342 = vld [vmem:[%s268 + $0x90] sm:$0xff]
        %v343 = vld [vmem:[%s268 + $0x98] sm:$0xff]
        %v344 = vld [vmem:[%s268 + $0xa0] sm:$0xff]
        %v345 = vld [vmem:[%s268 + $0xa8] sm:$0xff]
        %v346 = vld [vmem:[%s268 + $0xb0] sm:$0xff]
        %v347 = vld [vmem:[%s268 + $0xb8] sm:$0xff]
        %v348 = vld [vmem:[%s268 + $0xc0] sm:$0xff]
        %v349 = vld [vmem:[%s268 + $0xc8] sm:$0xff]
        %v350 = vld [vmem:[%s268 + $0xd0] sm:$0xff]
        %v351 = vld [vmem:[%s268 + $0xd8] sm:$0xff]
        %v352 = vld [vmem:[%s268 + $0xe0] sm:$0xff]
        %v353 = vld [vmem:[%s268 + $0xe8] sm:$0xff]
        %v354 = vld [vmem:[%s268 + $0xf0] sm:$0xff]
        %v355 = vld [vmem:[%s268 + $0xf8] sm:$0xff]
        %v356 = vld [vmem:[%s268 + $0x100] sm:$0xff]
        %v357 = vld [vmem:[%s268 + $0x108] sm:$0xff]
        %v358 = vld [vmem:[%s268 + $0x110] sm:$0xff]
        %v359 = vld [vmem:[%s268 + $0x118] sm:$0xff]
        %v360 = vld [vmem:[%s268 + $0x120] sm:$0xff]
        %v361 = vld [vmem:[%s268 + $0x128] sm:$0xff]
        %v362 = vld [vmem:[%s268 + $0x130] sm:$0xff]
        %v363 = vld [vmem:[%s268 + $0x138] sm:$0xff]
        %v364 = vld [vmem:[%s268 + $0x140] sm:$0xff]
        %v365 = vld [vmem:[%s268 + $0x148] sm:$0xff]
        %v366 = vld [vmem:[%s268 + $0x150] sm:$0xff]
        %v367 = vld [vmem:[%s268 + $0x158] sm:$0xff]
        %v368 = vld [vmem:[%s268 + $0x160] sm:$0xff]
        %v369 = vld [vmem:[%s268 + $0x168] sm:$0xff]
        %v370 = vld [vmem:[%s268 + $0x170] sm:$0xff]
        %v371 = vld [vmem:[%s268 + $0x178] sm:$0xff]
        %v372 = vld [vmem:[%s268 + $0x180] sm:$0xff]
        %v373 = vld [vmem:[%s268 + $0x188] sm:$0xff]
        %v374 = vld [vmem:[%s268 + $0x190] sm:$0xff]
        %v375 = vld [vmem:[%s268 + $0x198] sm:$0xff]
        %v376 = vld [vmem:[%s268 + $0x1a0] sm:$0xff]
        %v377 = vld [vmem:[%s268 + $0x1a8] sm:$0xff]
        %v378 = vld [vmem:[%s268 + $0x1b0] sm:$0xff]
        %v379 = vld [vmem:[%s268 + $0x1b8] sm:$0xff]
        %v380 = vld [vmem:[%s268 + $0x1c0] sm:$0xff]
        %v381 = vld [vmem:[%s268 + $0x1c8] sm:$0xff]
        %v382 = vld [vmem:[%s268 + $0x1d0] sm:$0xff]
        %v383 = vld [vmem:[%s268 + $0x1d8] sm:$0xff]
        %v384 = vld [vmem:[%s268 + $0x1e0] sm:$0xff]
        %v385 = vld [vmem:[%s268 + $0x1e8] sm:$0xff]
        %v386 = vld [vmem:[%s268 + $0x1f0] sm:$0xff]
        %v387 = vld [vmem:[%s268 + $0x1f8] sm:$0xff]
        %v388 = vld [vmem:[%s268 + $0x200] sm:$0xff]
        %v389 = vld [vmem:[%s268 + $0x208] sm:$0xff]
        %v390 = vld [vmem:[%s268 + $0x210] sm:$0xff]
        %v391 = vld [vmem:[%s268 + $0x218] sm:$0xff]
        %v392 = vld [vmem:[%s268 + $0x220] sm:$0xff]
        %v393 = vld [vmem:[%s268 + $0x228] sm:$0xff]
        %v394 = vld [vmem:[%s268 + $0x230] sm:$0xff]
        %v395 = vld [vmem:[%s268 + $0x238] sm:$0xff]
        %v396 = vld [vmem:[%s268 + $0x240] sm:$0xff]
        %v397 = vld [vmem:[%s268 + $0x248] sm:$0xff]
        %v398 = vld [vmem:[%s268 + $0x250] sm:$0xff]
        %v399 = vld [vmem:[%s268 + $0x258] sm:$0xff]
        %v400 = vld [vmem:[%s268 + $0x260] sm:$0xff]
        %v401 = vld [vmem:[%s268 + $0x268] sm:$0xff]
        %v402 = vld [vmem:[%s268 + $0x270] sm:$0xff]
        %v403 = vld [vmem:[%s268 + $0x278] sm:$0xff]
        %v404 = vld [vmem:[%s268 + $0x280] sm:$0xff]
        %v405 = vld [vmem:[%s268 + $0x288] sm:$0xff]
        %v406 = vld [vmem:[%s268 + $0x290] sm:$0xff]
        %v407 = vld [vmem:[%s268 + $0x298] sm:$0xff]
        %v408 = vld [vmem:[%s268 + $0x2a0] sm:$0xff]
        %v409 = vld [vmem:[%s268 + $0x2a8] sm:$0xff]
        %v410 = vld [vmem:[%s268 + $0x2b0] sm:$0xff]
        %v411 = vld [vmem:[%s268 + $0x2b8] sm:$0xff]
        %v412 = vld [vmem:[%s268 + $0x2c0] sm:$0xff]
        %v413 = vld [vmem:[%s268 + $0x2c8] sm:$0xff]
        %v414 = vld [vmem:[%s268 + $0x2d0] sm:$0xff]
        %v415 = vld [vmem:[%s268 + $0x2d8] sm:$0xff]
        %v416 = vld [vmem:[%s268 + $0x2e0] sm:$0xff]
        %v417 = vld [vmem:[%s268 + $0x2e8] sm:$0xff]
        %v418 = vld [vmem:[%s268 + $0x2f0] sm:$0xff]
        %v419 = vld [vmem:[%s268 + $0x2f8] sm:$0xff]
        %v422 = vunpack.c.l.b16 %v322
        %v423 = vunpack.c.h.b16 %v322
        %v424 = vunpack.c.l.b16 %v323
        %v425 = vpack.c.b16 %v422, %v422
        %v426 = vpack.c.b16 %v423, %v423
        %v427 = vpack.c.b16 %v424, %v424
        %v527 = vunpack.c.l.b16 %v324
        %v528 = vunpack.c.h.b16 %v324
        %v529 = vunpack.c.l.b16 %v325
        %v530 = vunpack.c.h.b16 %v325
        %v531 = vunpack.c.l.b16 %v326
        %v532 = vunpack.c.h.b16 %v326
        %v533 = vunpack.c.l.b16 %v327
        %v534 = vunpack.c.h.b16 %v327
        %v535 = vunpack.c.l.b16 %v328
        %v536 = vunpack.c.h.b16 %v328
        %v537 = vunpack.c.l.b16 %v329
        %v538 = vunpack.c.h.b16 %v329
        %v539 = vunpack.c.l.b16 %v330
        %v540 = vunpack.c.h.b16 %v330
        %v541 = vunpack.c.l.b16 %v331
        %v542 = vunpack.c.h.b16 %v331
        %v543 = vunpack.c.l.b16 %v332
        %v544 = vunpack.c.h.b16 %v332
        %v545 = vunpack.c.l.b16 %v333
        %v546 = vunpack.c.h.b16 %v333
        %v547 = vunpack.c.l.b16 %v334
        %v548 = vunpack.c.h.b16 %v334
        %v549 = vunpack.c.l.b16 %v335
        %v550 = vunpack.c.h.b16 %v335
        %v551 = vunpack.c.l.b16 %v336
        %v552 = vunpack.c.h.b16 %v336
        %v553 = vunpack.c.l.b16 %v337
        %v554 = vunpack.c.h.b16 %v337
        %v555 = vunpack.c.l.b16 %v338
        %v556 = vunpack.c.h.b16 %v338
        %v557 = vunpack.c.l.b16 %v339
        %v558 = vunpack.c.h.b16 %v339
        %v559 = vunpack.c.l.b16 %v340
        %v560 = vunpack.c.h.b16 %v340
        %v561 = vunpack.c.l.b16 %v341
        %v562 = vunpack.c.h.b16 %v341
        %v563 = vunpack.c.l.b16 %v342
        %v564 = vunpack.c.h.b16 %v342
        %v565 = vunpack.c.l.b16 %v343
        %v566 = vunpack.c.h.b16 %v343
        %v567 = vunpack.c.l.b16 %v344
        %v568 = vunpack.c.h.b16 %v344
        %v569 = vunpack.c.l.b16 %v345
        %v570 = vunpack.c.h.b16 %v345
        %v571 = vunpack.c.l.b16 %v346
        %v572 = vunpack.c.h.b16 %v346
        %v573 = vunpack.c.l.b16 %v347
        %v574 = vunpack.c.h.b16 %v347
        %v575 = vunpack.c.l.b16 %v348
        %v576 = vunpack.c.h.b16 %v348
        %v577 = vunpack.c.l.b16 %v349
        %v578 = vunpack.c.h.b16 %v349
        %v579 = vunpack.c.l.b16 %v350
        %v580 = vunpack.c.h.b16 %v350
        %v581 = vunpack.c.l.b16 %v351
        %v582 = vunpack.c.h.b16 %v351
        %v583 = vunpack.c.l.b16 %v352
        %v584 = vunpack.c.h.b16 %v352
        %v585 = vunpack.c.l.b16 %v353
        %v586 = vunpack.c.h.b16 %v353
        %v587 = vunpack.c.l.b16 %v354
        %v588 = vunpack.c.h.b16 %v354
        %v589 = vunpack.c.l.b16 %v355
        %v590 = vunpack.c.h.b16 %v355
        %v591 = vunpack.c.l.b16 %v356
        %v592 = vunpack.c.h.b16 %v356
        %v593 = vunpack.c.l.b16 %v357
        %v594 = vunpack.c.h.b16 %v357
        %v595 = vunpack.c.l.b16 %v358
        %v596 = vunpack.c.h.b16 %v358
        %v597 = vunpack.c.l.b16 %v359
        %v598 = vunpack.c.h.b16 %v359
        %v599 = vunpack.c.l.b16 %v360
        %v600 = vunpack.c.h.b16 %v360
        %v601 = vunpack.c.l.b16 %v361
        %v602 = vunpack.c.h.b16 %v361
        %v603 = vunpack.c.l.b16 %v362
        %v604 = vunpack.c.h.b16 %v362
        %v605 = vunpack.c.l.b16 %v363
        %v606 = vunpack.c.h.b16 %v363
        %v607 = vunpack.c.l.b16 %v364
        %v608 = vunpack.c.h.b16 %v364
        %v609 = vunpack.c.l.b16 %v365
        %v610 = vunpack.c.h.b16 %v365
        %v611 = vunpack.c.l.b16 %v366
        %v612 = vunpack.c.h.b16 %v366
        %v613 = vunpack.c.l.b16 %v367
        %v614 = vunpack.c.h.b16 %v367
        %v615 = vunpack.c.l.b16 %v368
        %v616 = vunpack.c.h.b16 %v368
        %v617 = vunpack.c.l.b16 %v369
        %v618 = vunpack.c.h.b16 %v369
        %v619 = vunpack.c.l.b16 %v370
        %v620 = vunpack.c.h.b16 %v370
        %v621 = vunpack.c.l.b16 %v371
        %v622 = vunpack.c.h.b16 %v371
        %v623 = vunpack.c.l.b16 %v372
        %v624 = vunpack.c.h.b16 %v372
        %v625 = vunpack.c.l.b16 %v373
        %v626 = vunpack.c.h.b16 %v373
        %v627 = vunpack.c.l.b16 %v374
        %v628 = vunpack.c.h.b16 %v374
        %v629 = vunpack.c.l.b16 %v375
        %v630 = vunpack.c.h.b16 %v375
        %v631 = vunpack.c.l.b16 %v376
        %v632 = vunpack.c.h.b16 %v376
        %v633 = vunpack.c.l.b16 %v377
        %v634 = vunpack.c.h.b16 %v377
        %v635 = vunpack.c.l.b16 %v378
        %v636 = vunpack.c.h.b16 %v378
        %v637 = vunpack.c.l.b16 %v379
        %v638 = vunpack.c.h.b16 %v379
        %v639 = vunpack.c.l.b16 %v380
        %v640 = vunpack.c.h.b16 %v380
        %v641 = vunpack.c.l.b16 %v381
        %v642 = vunpack.c.h.b16 %v381
        %v643 = vunpack.c.l.b16 %v382
        %v644 = vunpack.c.h.b16 %v382
        %v645 = vunpack.c.l.b16 %v383
        %v646 = vunpack.c.h.b16 %v383
        %v647 = vunpack.c.l.b16 %v384
        %v648 = vunpack.c.h.b16 %v384
        %v649 = vunpack.c.l.b16 %v385
        %v650 = vunpack.c.h.b16 %v385
        %v651 = vunpack.c.l.b16 %v386
        %v652 = vunpack.c.h.b16 %v386
        %v653 = vunpack.c.l.b16 %v387
        %v654 = vunpack.c.h.b16 %v387
        %v655 = vunpack.c.l.b16 %v388
        %v656 = vunpack.c.h.b16 %v388
        %v657 = vunpack.c.l.b16 %v389
        %v658 = vunpack.c.h.b16 %v389
        %v659 = vunpack.c.l.b16 %v390
        %v660 = vunpack.c.h.b16 %v390
        %v661 = vunpack.c.l.b16 %v391
        %v662 = vunpack.c.h.b16 %v391
        %v663 = vunpack.c.l.b16 %v392
        %v664 = vunpack.c.h.b16 %v392
        %v665 = vunpack.c.l.b16 %v393
        %v666 = vunpack.c.h.b16 %v393
        %v667 = vunpack.c.l.b16 %v394
        %v668 = vunpack.c.h.b16 %v394
        %v669 = vunpack.c.l.b16 %v395
        %v670 = vunpack.c.h.b16 %v395
        %v671 = vunpack.c.l.b16 %v396
        %v672 = vunpack.c.h.b16 %v396
        %v673 = vunpack.c.l.b16 %v397
        %v674 = vunpack.c.h.b16 %v397
        %v675 = vunpack.c.l.b16 %v398
        %v676 = vunpack.c.h.b16 %v398
        %v677 = vunpack.c.l.b16 %v399
        %v678 = vunpack.c.h.b16 %v399
        %v679 = vunpack.c.l.b16 %v400
        %v680 = vunpack.c.h.b16 %v400
        %v681 = vunpack.c.l.b16 %v401
        %v682 = vunpack.c.h.b16 %v401
        %v683 = vunpack.c.l.b16 %v402
        %v684 = vunpack.c.h.b16 %v402
        %v685 = vunpack.c.l.b16 %v403
        %v686 = vunpack.c.h.b16 %v403
        %v687 = vunpack.c.l.b16 %v404
        %v688 = vunpack.c.h.b16 %v404
        %v689 = vunpack.c.l.b16 %v405
        %v690 = vunpack.c.h.b16 %v405
        %v691 = vunpack.c.l.b16 %v406
        %v692 = vunpack.c.h.b16 %v406
        %v693 = vunpack.c.l.b16 %v407
        %v694 = vunpack.c.h.b16 %v407
        %v695 = vunpack.c.l.b16 %v408
        %v696 = vunpack.c.h.b16 %v408
        %v697 = vunpack.c.l.b16 %v409
        %v698 = vunpack.c.h.b16 %v409
        %v699 = vunpack.c.l.b16 %v410
        %v700 = vunpack.c.h.b16 %v410
        %v701 = vunpack.c.l.b16 %v411
        %v702 = vunpack.c.h.b16 %v411
        %v703 = vunpack.c.l.b16 %v412
        %v704 = vunpack.c.h.b16 %v412
        %v705 = vunpack.c.l.b16 %v413
        %v706 = vunpack.c.h.b16 %v413
        %v707 = vunpack.c.l.b16 %v414
        %v708 = vunpack.c.h.b16 %v414
        %v709 = vunpack.c.l.b16 %v415
        %v710 = vunpack.c.h.b16 %v415
        %v711 = vunpack.c.l.b16 %v416
        %v712 = vunpack.c.h.b16 %v416
        %v713 = vunpack.c.l.b16 %v417
        %v714 = vunpack.c.h.b16 %v417
        %v715 = vunpack.c.l.b16 %v418
        %v716 = vunpack.c.h.b16 %v418
        %v717 = vunpack.c.l.b16 %v419
        %v718 = vunpack.c.h.b16 %v419
        %v719 = vpack.c.b16 %v531, %v527
        %v720 = vpack.c.b16 %v532, %v528
        %v721 = vpack.c.b16 %v533, %v529
        %v722 = vpack.c.b16 %v534, %v530
        %v723 = vpack.c.b16 %v539, %v535
        %v724 = vpack.c.b16 %v540, %v536
        %v725 = vpack.c.b16 %v541, %v537
        %v726 = vpack.c.b16 %v542, %v538
        %v727 = vpack.c.b16 %v547, %v543
        %v728 = vpack.c.b16 %v548, %v544
        %v729 = vpack.c.b16 %v549, %v545
        %v730 = vpack.c.b16 %v550, %v546
        %v731 = vpack.c.b16 %v555, %v551
        %v732 = vpack.c.b16 %v556, %v552
        %v733 = vpack.c.b16 %v557, %v553
        %v734 = vpack.c.b16 %v558, %v554
        %v735 = vpack.c.b16 %v563, %v559
        %v736 = vpack.c.b16 %v564, %v560
        %v737 = vpack.c.b16 %v565, %v561
        %v738 = vpack.c.b16 %v566, %v562
        %v739 = vpack.c.b16 %v571, %v567
        %v740 = vpack.c.b16 %v572, %v568
        %v741 = vpack.c.b16 %v573, %v569
        %v742 = vpack.c.b16 %v574, %v570
        %v743 = vpack.c.b16 %v579, %v575
        %v744 = vpack.c.b16 %v580, %v576
        %v745 = vpack.c.b16 %v581, %v577
        %v746 = vpack.c.b16 %v582, %v578
        %v747 = vpack.c.b16 %v587, %v583
        %v748 = vpack.c.b16 %v588, %v584
        %v749 = vpack.c.b16 %v589, %v585
        %v750 = vpack.c.b16 %v590, %v586
        %v751 = vpack.c.b16 %v595, %v591
        %v752 = vpack.c.b16 %v596, %v592
        %v753 = vpack.c.b16 %v597, %v593
        %v754 = vpack.c.b16 %v598, %v594
        %v755 = vpack.c.b16 %v603, %v599
        %v756 = vpack.c.b16 %v604, %v600
        %v757 = vpack.c.b16 %v605, %v601
        %v758 = vpack.c.b16 %v606, %v602
        %v759 = vpack.c.b16 %v611, %v607
        %v760 = vpack.c.b16 %v612, %v608
        %v761 = vpack.c.b16 %v613, %v609
        %v762 = vpack.c.b16 %v614, %v610
        %v763 = vpack.c.b16 %v619, %v615
        %v764 = vpack.c.b16 %v620, %v616
        %v765 = vpack.c.b16 %v621, %v617
        %v766 = vpack.c.b16 %v622, %v618
        %v767 = vpack.c.b16 %v627, %v623
        %v768 = vpack.c.b16 %v628, %v624
        %v769 = vpack.c.b16 %v629, %v625
        %v770 = vpack.c.b16 %v630, %v626
        %v771 = vpack.c.b16 %v635, %v631
        %v772 = vpack.c.b16 %v636, %v632
        %v773 = vpack.c.b16 %v637, %v633
        %v774 = vpack.c.b16 %v638, %v634
        %v775 = vpack.c.b16 %v643, %v639
        %v776 = vpack.c.b16 %v644, %v640
        %v777 = vpack.c.b16 %v645, %v641
        %v778 = vpack.c.b16 %v646, %v642
        %v779 = vpack.c.b16 %v651, %v647
        %v780 = vpack.c.b16 %v652, %v648
        %v781 = vpack.c.b16 %v653, %v649
        %v782 = vpack.c.b16 %v654, %v650
        %v783 = vpack.c.b16 %v659, %v655
        %v784 = vpack.c.b16 %v660, %v656
        %v785 = vpack.c.b16 %v661, %v657
        %v786 = vpack.c.b16 %v662, %v658
        %v787 = vpack.c.b16 %v667, %v663
        %v788 = vpack.c.b16 %v668, %v664
        %v789 = vpack.c.b16 %v669, %v665
        %v790 = vpack.c.b16 %v670, %v666
        %v791 = vpack.c.b16 %v675, %v671
        %v792 = vpack.c.b16 %v676, %v672
        %v793 = vpack.c.b16 %v677, %v673
        %v794 = vpack.c.b16 %v678, %v674
        %v795 = vpack.c.b16 %v683, %v679
        %v796 = vpack.c.b16 %v684, %v680
        %v797 = vpack.c.b16 %v685, %v681
        %v798 = vpack.c.b16 %v686, %v682
        %v799 = vpack.c.b16 %v691, %v687
        %v800 = vpack.c.b16 %v692, %v688
        %v801 = vpack.c.b16 %v693, %v689
        %v802 = vpack.c.b16 %v694, %v690
        %v803 = vpack.c.b16 %v699, %v695
        %v804 = vpack.c.b16 %v700, %v696
        %v805 = vpack.c.b16 %v701, %v697
        %v806 = vpack.c.b16 %v702, %v698
        %v807 = vpack.c.b16 %v707, %v703
        %v808 = vpack.c.b16 %v708, %v704
        %v809 = vpack.c.b16 %v709, %v705
        %v810 = vpack.c.b16 %v710, %v706
        %v811 = vpack.c.b16 %v715, %v711
        %v812 = vpack.c.b16 %v716, %v712
        %v813 = vpack.c.b16 %v717, %v713
        %v814 = vpack.c.b16 %v718, %v714
        %911 = vmatprep.subr.bf16.mxu0 %v720
        %912 = vmatpush1.bf16.msra.mxu0 %v719
        %913 = vmatprep.subr.bf16.mxu0 %v724
        %914 = vmatpush1.bf16.msra.mxu0 %v723
        %915 = vmatprep.subr.bf16.mxu0 %v728
        %916 = vmatpush1.bf16.msra.mxu0 %v727
        %917 = vmatprep.subr.bf16.mxu0 %v732
        %918 = vmatpush1.bf16.msra.mxu0 %v731
        %919 = vmatprep.subr.bf16.mxu0 %v736
        %920 = vmatpush1.bf16.msra.mxu0 %v735
        %921 = vmatprep.subr.bf16.mxu0 %v740
        %922 = vmatpush1.bf16.msra.mxu0 %v739
        %923 = vmatprep.subr.bf16.mxu0 %v744
        %924 = vmatpush1.bf16.msra.mxu0 %v743
        %925 = vmatprep.subr.bf16.mxu0 %v748
        %926 = vmatpush1.bf16.msra.mxu0 %v747
        %927 = vmatprep.subr.bf16.mxu0 %v752
        %928 = vmatpush1.bf16.msra.mxu0 %v751
        %929 = vmatprep.subr.bf16.mxu0 %v756
        %930 = vmatpush1.bf16.msra.mxu0 %v755
        %931 = vmatprep.subr.bf16.mxu0 %v760
        %932 = vmatpush1.bf16.msra.mxu0 %v759
        %933 = vmatprep.subr.bf16.mxu0 %v764
        %934 = vmatpush1.bf16.msra.mxu0 %v763
        %935 = vmatprep.subr.bf16.mxu0 %v768
        %936 = vmatpush1.bf16.msra.mxu0 %v767
        %937 = vmatprep.subr.bf16.mxu0 %v772
        %938 = vmatpush1.bf16.msra.mxu0 %v771
        %939 = vmatprep.subr.bf16.mxu0 %v776
        %940 = vmatpush1.bf16.msra.mxu0 %v775
        %941 = vmatprep.subr.bf16.mxu0 %v780
        %942 = vmatpush1.bf16.msra.mxu0 %v779
        %943 = vmatprep.mubr.bf16.mxu0 %v426
        %944 = vmatmul.mubr.bf16.gmra.mrb[0].mxu0 %v425
        %v945 = vpop.f32.mrb[0].mxu0
        %v946 = vadd.f32 0.0, %v945
        %v947 = vpop.f32.mrb[0].mxu0
        %v948 = vadd.f32 0.0, %v947
        %v949 = vpop.f32.mrb[0].mxu0
        %v950 = vpop.f32.mrb[0].mxu0
        %951 = vdwg.mxu0
        %952 = vmatprep.subr.bf16.mxu0 %v784
        %953 = vmatpush1.bf16.msra.mxu0 %v783
        %954 = vmatprep.subr.bf16.mxu0 %v788
        %955 = vmatpush1.bf16.msra.mxu0 %v787
        %956 = vmatprep.subr.bf16.mxu0 %v792
        %957 = vmatpush1.bf16.msra.mxu0 %v791
        %958 = vmatprep.subr.bf16.mxu0 %v796
        %959 = vmatpush1.bf16.msra.mxu0 %v795
        %960 = vmatprep.subr.bf16.mxu0 %v800
        %961 = vmatpush1.bf16.msra.mxu0 %v799
        %962 = vmatprep.subr.bf16.mxu0 %v804
        %963 = vmatpush1.bf16.msra.mxu0 %v803
        %964 = vmatprep.subr.bf16.mxu0 %v808
        %965 = vmatpush1.bf16.msra.mxu0 %v807
        %966 = vmatprep.subr.bf16.mxu0 %v812
        %967 = vmatpush1.bf16.msra.mxu0 %v811
        %968 = vmatprep.subr.bf16.mxu0 0
        %969 = vmatpush1.bf16.msra.mxu0 0
        %970 = vmatprep.subr.bf16.mxu0 0
        %971 = vmatpush1.bf16.msra.mxu0 0
        %972 = vmatprep.subr.bf16.mxu0 0
        %973 = vmatpush1.bf16.msra.mxu0 0
        %974 = vmatprep.subr.bf16.mxu0 0
        %975 = vmatpush1.bf16.msra.mxu0 0
        %976 = vmatprep.subr.bf16.mxu0 0
        %977 = vmatpush1.bf16.msra.mxu0 0
        %978 = vmatprep.subr.bf16.mxu0 0
        %979 = vmatpush1.bf16.msra.mxu0 0
        %980 = vmatprep.subr.bf16.mxu0 0
        %981 = vmatpush1.bf16.msra.mxu0 0
        %982 = vmatprep.subr.bf16.mxu0 0
        %983 = vmatpush1.bf16.msra.mxu0 0
        %984 = vmatprep.mubr.bf16.mxu0 0
        %985 = vmatmul.mubr.bf16.gmra.mrb[0].mxu0 %v427
        %v986 = vpop.f32.mrb[0].mxu0
        %v987 = vadd.f32 %v946, %v986
        %v988 = vpop.f32.mrb[0].mxu0
        %v989 = vadd.f32 %v948, %v988
        %v990 = vpop.f32.mrb[0].mxu0
        %v991 = vpop.f32.mrb[0].mxu0
        %992 = vdwg.mxu0
        %993 = vmatprep.subr.bf16.mxu0 %v722
        %994 = vmatpush1.bf16.msra.mxu0 %v721
        %995 = vmatprep.subr.bf16.mxu0 %v726
        %996 = vmatpush1.bf16.msra.mxu0 %v725
        %997 = vmatprep.subr.bf16.mxu0 %v730
        %998 = vmatpush1.bf16.msra.mxu0 %v729
        %999 = vmatprep.subr.bf16.mxu0 %v734
        %1000 = vmatpush1.bf16.msra.mxu0 %v733
        %1001 = vmatprep.subr.bf16.mxu0 %v738
        %1002 = vmatpush1.bf16.msra.mxu0 %v737
        %1003 = vmatprep.subr.bf16.mxu0 %v742
        %1004 = vmatpush1.bf16.msra.mxu0 %v741
        %1005 = vmatprep.subr.bf16.mxu0 %v746
        %1006 = vmatpush1.bf16.msra.mxu0 %v745
        %1007 = vmatprep.subr.bf16.mxu0 %v750
        %1008 = vmatpush1.bf16.msra.mxu0 %v749
        %1009 = vmatprep.subr.bf16.mxu0 %v754
        %1010 = vmatpush1.bf16.msra.mxu0 %v753
        %1011 = vmatprep.subr.bf16.mxu0 %v758
        %1012 = vmatpush1.bf16.msra.mxu0 %v757
        %1013 = vmatprep.subr.bf16.mxu0 %v762
        %1014 = vmatpush1.bf16.msra.mxu0 %v761
        %1015 = vmatprep.subr.bf16.mxu0 %v766
        %1016 = vmatpush1.bf16.msra.mxu0 %v765
        %1017 = vmatprep.subr.bf16.mxu0 %v770
        %1018 = vmatpush1.bf16.msra.mxu0 %v769
        %1019 = vmatprep.subr.bf16.mxu0 %v774
        %1020 = vmatpush1.bf16.msra.mxu0 %v773
        %1021 = vmatprep.subr.bf16.mxu0 %v778
        %1022 = vmatpush1.bf16.msra.mxu0 %v777
        %1023 = vmatprep.subr.bf16.mxu0 %v782
        %1024 = vmatpush1.bf16.msra.mxu0 %v781
        %1025 = vmatprep.mubr.bf16.mxu0 %v426
        %1026 = vmatmul.mubr.bf16.gmra.mrb[0].mxu0 %v425
        %v1027 = vpop.f32.mrb[0].mxu0
        %v1028 = vadd.f32 0.0, %v1027
        %v1029 = vpop.f32.mrb[0].mxu0
        %v1030 = vadd.f32 0.0, %v1029
        %v1031 = vpop.f32.mrb[0].mxu0
        %v1032 = vpop.f32.mrb[0].mxu0
        %1033 = vdwg.mxu0
        %1034 = vmatprep.subr.bf16.mxu0 %v786
        %1035 = vmatpush1.bf16.msra.mxu0 %v785
        %1036 = vmatprep.subr.bf16.mxu0 %v790
        %1037 = vmatpush1.bf16.msra.mxu0 %v789
        %1038 = vmatprep.subr.bf16.mxu0 %v794
        %1039 = vmatpush1.bf16.msra.mxu0 %v793
        %1040 = vmatprep.subr.bf16.mxu0 %v798
        %1041 = vmatpush1.bf16.msra.mxu0 %v797
        %1042 = vmatprep.subr.bf16.mxu0 %v802
        %1043 = vmatpush1.bf16.msra.mxu0 %v801
        %1044 = vmatprep.subr.bf16.mxu0 %v806
        %1045 = vmatpush1.bf16.msra.mxu0 %v805
        %1046 = vmatprep.subr.bf16.mxu0 %v810
        %1047 = vmatpush1.bf16.msra.mxu0 %v809
        %1048 = vmatprep.subr.bf16.mxu0 %v814
        %1049 = vmatpush1.bf16.msra.mxu0 %v813
        %1050 = vmatprep.subr.bf16.mxu0 0
        %1051 = vmatpush1.bf16.msra.mxu0 0
        %1052 = vmatprep.subr.bf16.mxu0 0
        %1053 = vmatpush1.bf16.msra.mxu0 0
        %1054 = vmatprep.subr.bf16.mxu0 0
        %1055 = vmatpush1.bf16.msra.mxu0 0
        %1056 = vmatprep.subr.bf16.mxu0 0
        %1057 = vmatpush1.bf16.msra.mxu0 0
        %1058 = vmatprep.subr.bf16.mxu0 0
        %1059 = vmatpush1.bf16.msra.mxu0 0
        %1060 = vmatprep.subr.bf16.mxu0 0
        %1061 = vmatpush1.bf16.msra.mxu0 0
        %1062 = vmatprep.subr.bf16.mxu0 0
        %1063 = vmatpush1.bf16.msra.mxu0 0
        %1064 = vmatprep.subr.bf16.mxu0 0
        %1065 = vmatpush1.bf16.msra.mxu0 0
        %1066 = vmatprep.mubr.bf16.mxu0 0
        %1067 = vmatmul.mubr.bf16.gmra.mrb[0].mxu0 %v427
        %v1068 = vpop.f32.mrb[0].mxu0
        %v1069 = vadd.f32 %v1028, %v1068
        %v1070 = vpop.f32.mrb[0].mxu0
        %v1071 = vadd.f32 %v1030, %v1070
        %v1072 = vpop.f32.mrb[0].mxu0
        %v1073 = vpop.f32.mrb[0].mxu0
        %1074 = vdwg.mxu0
        %v1075 = vadd.f32 %v318, %v987
        %v1076 = vadd.f32 %v319, %v989
        %v1077 = vadd.f32 %v320, %v1069
        %v1078 = vadd.f32 %v321, %v1071
        %1079 = vst [vmem:[#allocation2] sm:$0xff] %v1075
        %1080 = vst [vmem:[#allocation2 + $0x8] sm:$0xff] %v1076
        %1081 = vst [vmem:[#allocation2 + $0x10] sm:$0xff] %v1077
        %1082 = vst [vmem:[#allocation2 + $0x18] sm:$0xff] %v1078
        %p1083 = scmp.eq.s32.totalorder %s24, 2
        // Predicated region
        $region65: #{tpu_custom_call.1} parent=39 // pred_check
          %p1084 = pneg %p1083
        $region66: #{tpu_custom_call.1} parent=39 // pred_check_branch
          %1086 = sbr.rel (%p1084) target = $region68
        $region67: #{tpu_custom_call.1} parent=39 // pred_region
          %v1087 = vld [vmem:[#allocation2] sm:$0xff]
          %v1088 = vld [vmem:[#allocation2 + $0x8] sm:$0xff]
          %v1089 = vld [vmem:[#allocation2 + $0x10] sm:$0xff]
          %v1090 = vld [vmem:[#allocation2 + $0x18] sm:$0xff]
          %v1091 = vld [vmem:[#allocation8] sm:$0xf]
          %v1093 = vlaneseq
          %v1094 = vshrl.u32 %v1093, 7
          %v1095 = vsub.s32 0, %v1094
          %v1096 = vrot.slane %v1091, %v1095
          %v1097 = vlaneseq
          %v1098 = vshrl.u32 %v1097, 7
          %v1099 = vsub.s32 1, %v1098
          %v1100 = vrot.slane %v1091, %v1099
          %v1101 = vlaneseq
          %v1102 = vshrl.u32 %v1101, 7
          %v1103 = vsub.s32 2, %v1102
          %v1104 = vrot.slane %v1091, %v1103
          %v1105 = vlaneseq
          %v1106 = vshrl.u32 %v1105, 7
          %v1107 = vsub.s32 3, %v1106
          %v1108 = vrot.slane %v1091, %v1107
          %v1113 = vadd.f32 %v1087, %v1096
          %v1114 = vadd.f32 %v1088, %v1100
          %v1115 = vadd.f32 %v1089, %v1104
          %v1116 = vadd.f32 %v1090, %v1108
          %v1117 = vrot.slane %v1113, 4
          %v1118 = vadd.f32 %v1113, %v1117
          %v1119 = vrot.slane %v1118, 2
          %v1120 = vadd.f32 %v1118, %v1119
          %v1121 = vrot.slane %v1120, 1
          %v1122 = vadd.f32 %v1120, %v1121
          %v1123 = vrot.slane %v1114, 4
          %v1124 = vadd.f32 %v1114, %v1123
          %v1125 = vrot.slane %v1124, 2
          %v1126 = vadd.f32 %v1124, %v1125
          %v1127 = vrot.slane %v1126, 1
          %v1128 = vadd.f32 %v1126, %v1127
          %v1129 = vrot.slane %v1115, 4
          %v1130 = vadd.f32 %v1115, %v1129
          %v1131 = vrot.slane %v1130, 2
          %v1132 = vadd.f32 %v1130, %v1131
          %v1133 = vrot.slane %v1132, 1
          %v1134 = vadd.f32 %v1132, %v1133
          %v1135 = vrot.slane %v1116, 4
          %v1136 = vadd.f32 %v1116, %v1135
          %v1137 = vrot.slane %v1136, 2
          %v1138 = vadd.f32 %v1136, %v1137
          %v1139 = vrot.slane %v1138, 1
          %v1140 = vadd.f32 %v1138, %v1139
          %v1141 = vrcp.pop 8.0
          %v1142 = vmul.f32 %v1122, %v1141
          %v1143 = vmul.f32 %v1128, %v1141
          %v1144 = vmul.f32 %v1134, %v1141
          %v1145 = vmul.f32 %v1140, %v1141
          %v1146 = vsub.f32 %v1113, %v1142
          %v1147 = vsub.f32 %v1114, %v1143
          %v1148 = vsub.f32 %v1115, %v1144
          %v1149 = vsub.f32 %v1116, %v1145
          %v1150 = vmul.f32 %v1146, %v1146
          %v1151 = vmul.f32 %v1147, %v1147
          %v1152 = vmul.f32 %v1148, %v1148
          %v1153 = vmul.f32 %v1149, %v1149
          %v1154 = vrot.slane %v1150, 4
          %v1155 = vadd.f32 %v1150, %v1154
          %v1156 = vrot.slane %v1155, 2
          %v1157 = vadd.f32 %v1155, %v1156
          %v1158 = vrot.slane %v1157, 1
          %v1159 = vadd.f32 %v1157, %v1158
          %v1160 = vrot.slane %v1151, 4
          %v1161 = vadd.f32 %v1151, %v1160
          %v1162 = vrot.slane %v1161, 2
          %v1163 = vadd.f32 %v1161, %v1162
          %v1164 = vrot.slane %v1163, 1
          %v1165 = vadd.f32 %v1163, %v1164
          %v1166 = vrot.slane %v1152, 4
          %v1167 = vadd.f32 %v1152, %v1166
          %v1168 = vrot.slane %v1167, 2
          %v1169 = vadd.f32 %v1167, %v1168
          %v1170 = vrot.slane %v1169, 1
          %v1171 = vadd.f32 %v1169, %v1170
          %v1172 = vrot.slane %v1153, 4
          %v1173 = vadd.f32 %v1153, %v1172
          %v1174 = vrot.slane %v1173, 2
          %v1175 = vadd.f32 %v1173, %v1174
          %v1176 = vrot.slane %v1175, 1
          %v1177 = vadd.f32 %v1175, %v1176
          %v1178 = vmul.f32 %v1159, %v1141
          %v1179 = vmul.f32 %v1165, %v1141
          %v1180 = vmul.f32 %v1171, %v1141
          %v1181 = vmul.f32 %v1177, %v1141
          %v1182 = vadd.f32 %v1178, 1e-05
          %v1183 = vadd.f32 %v1179, 1e-05
          %v1184 = vadd.f32 %v1180, 1e-05
          %v1185 = vadd.f32 %v1181, 1e-05
          %v1186 = vrsqrt.pop %v1182
          %v1187 = vrsqrt.pop %v1183
          %v1188 = vrsqrt.pop %v1184
          %v1189 = vrsqrt.pop %v1185
          %v1190 = vmul.f32 %v1146, %v1186
          %v1191 = vmul.f32 %v1147, %v1187
          %v1192 = vmul.f32 %v1148, %v1188
          %v1193 = vmul.f32 %v1149, %v1189
          %v1194 = vld [vmem:[#allocation9] sm:$0xf]
          %v1196 = vlaneseq
          %v1197 = vshrl.u32 %v1196, 7
          %v1198 = vsub.s32 0, %v1197
          %v1199 = vrot.slane %v1194, %v1198
          %v1200 = vlaneseq
          %v1201 = vshrl.u32 %v1200, 7
          %v1202 = vsub.s32 1, %v1201
          %v1203 = vrot.slane %v1194, %v1202
          %v1204 = vlaneseq
          %v1205 = vshrl.u32 %v1204, 7
          %v1206 = vsub.s32 2, %v1205
          %v1207 = vrot.slane %v1194, %v1206
          %v1208 = vlaneseq
          %v1209 = vshrl.u32 %v1208, 7
          %v1210 = vsub.s32 3, %v1209
          %v1211 = vrot.slane %v1194, %v1210
          %v1216 = vmul.f32 %v1199, %v1190
          %v1217 = vmul.f32 %v1203, %v1191
          %v1218 = vmul.f32 %v1207, %v1192
          %v1219 = vmul.f32 %v1211, %v1193
          %v1220 = vld [vmem:[#allocation11] sm:$0xf]
          %v1222 = vlaneseq
          %v1223 = vshrl.u32 %v1222, 7
          %v1224 = vsub.s32 0, %v1223
          %v1225 = vrot.slane %v1220, %v1224
          %v1226 = vlaneseq
          %v1227 = vshrl.u32 %v1226, 7
          %v1228 = vsub.s32 1, %v1227
          %v1229 = vrot.slane %v1220, %v1228
          %v1230 = vlaneseq
          %v1231 = vshrl.u32 %v1230, 7
          %v1232 = vsub.s32 2, %v1231
          %v1233 = vrot.slane %v1220, %v1232
          %v1234 = vlaneseq
          %v1235 = vshrl.u32 %v1234, 7
          %v1236 = vsub.s32 3, %v1235
          %v1237 = vrot.slane %v1220, %v1236
          %v1242 = vadd.f32 %v1216, %v1225
          %v1243 = vadd.f32 %v1217, %v1229
          %v1244 = vadd.f32 %v1218, %v1233
          %v1245 = vadd.f32 %v1219, %v1237
          %v1246 = vmax.f32 %v1242, 0.0
          %v1247 = vmax.f32 %v1243, 0.0
          %v1248 = vmax.f32 %v1244, 0.0
          %v1249 = vmax.f32 %v1245, 0.0
          %v1250 = vmul.f32 %v1246, %v1246
          %v1251 = vmul.f32 %v1247, %v1247
          %v1252 = vmul.f32 %v1248, %v1248
          %v1253 = vmul.f32 %v1249, %v1249
          %v1254 = vadd.f32 %v1250, %v1251
          %v1255 = vadd.f32 %v1254, %v1252
          %v1256 = vadd.f32 %v1255, %v1253
          %1257 = vadd.xlane.f32.xlu0 %v1256
          %v1258 = vpop.xlane.xlu0 %1257
          %v1259 = vmax.f32 %v1258, 1e-24
          %v1260 = vrsqrt.pop %v1259
          %v1261 = vmul.f32 %v1246, %v1260
          %v1262 = vmul.f32 %v1247, %v1260
          %v1263 = vmul.f32 %v1248, %v1260
          %v1264 = vmul.f32 %v1249, %v1260
          %v1265 = vpack.c.bf16 %v1261, %v1261
          %v1266 = vpack.c.bf16 %v1262, %v1262
          %v1267 = vpack.c.bf16 %v1263, %v1263
          %v1268 = vpack.c.bf16 %v1264, %v1264
          %v1273 = vunpack.c.l.b16 %v1265
          %v1274 = vunpack.c.l.b16 %v1266
          %v1275 = vunpack.c.l.b16 %v1267
          %v1276 = vunpack.c.l.b16 %v1268
          %v1277 = vpack.c.b16 %v1274, %v1273
          %v1278 = vpack.c.b16 %v1276, %v1275
          %1281 = vst [vmem:[#allocation12] sm:$0xff] %v1277
          %1282 = vst [vmem:[#allocation12 + $0x8] sm:$0xff] %v1278
        $region68: #{tpu_custom_call.1} parent=39 // pred_fallthru
          _
        // Predicated region
        $region69: #{tpu_custom_call.1} parent=39 // pred_check
          %p1283 = pneg %p152
        $region70: #{tpu_custom_call.1} parent=39 // pred_check_branch
          %1285 = sbr.rel (%p1283) target = $region72
        $region71: #{tpu_custom_call.1} parent=39 // pred_region
          %s1287 = ssub.s32 256, 256
          %1288 = vsyncadd [#allocation5], %s1287
          %s1290 = sshll.u32 [#allocation12], 4
          %s1291 = int_to_ptr.vmem [resolvable:$true] %s1290
          %1293 = dma.vmem_to_hbm [thread:$0]  %s1291, 256, %s5, [#allocation5]
        $region72: #{tpu_custom_call.1} parent=39 // pred_fallthru
          _
        // Predicated region
        $region73: #{tpu_custom_call.1} parent=39 // pred_check
          %p1294 = pneg %p152
        $region74: #{tpu_custom_call.1} parent=39 // pred_check_branch
          %1296 = sbr.rel (%p1294) target = $region76
        $region75: #{tpu_custom_call.1} parent=39 // pred_region
          %1297 = dma.done [#allocation5], 256
        $region76: #{tpu_custom_call.1} parent=39 // pred_fallthru
          _
      $region40: #{tpu_custom_call.1} parent=5 // pred_fallthru
        _
      %p1298 = scmp.le.s32.totalorder 2, %s19
      // Predicated region
      $region77: #{tpu_custom_call.1} parent=5 // pred_check
        %p1299 = pneg %p1298
      $region78: #{tpu_custom_call.1} parent=5 // pred_check_branch
        %1301 = sbr.rel (%p1299) target = $region80
      $region79: #{tpu_custom_call.1} parent=5 // pred_region
        %s1302 = ssub.s32 %s19, 2
      $region80: #{tpu_custom_call.1} parent=5 // pred_fallthru
        _
    $region6: #{tpu_custom_call.1} parent=1 // loop_footer
      %s23 = sadd.s32 1, %s19
    $region7: #{tpu_custom_call.1} parent=1 // loop_footer_branch
      %18 = sbr.rel target = $region3
    $region8: #{tpu_custom_call.1} parent=1 // loop_exit
      _
    %1303 = vsyncpa [#allocation4], 1
    %s1304 = scalar_lea.sflag [#allocation4], 1
    %1305 = vsyncpa %s1304, 1
    %1306 = vsyncpa [#allocation7], 1
    %s1307 = scalar_lea.sflag [#allocation7], 1
    %1308 = vsyncpa %s1307, 1
    %1309 = vsyncpa [#allocation10], 1
    %1310 = vsyncpa [#allocation5], 1
    %s1311 = scalar_lea.sflag [#allocation5], 1
    %1312 = vsyncpa %s1311, 1

</llo_original>
